<compile_context>
chip_gen: v7x
topology: tpu7x:2x2x1
jax: 0.10.0
libtpu: 0.0.40
codegen_flags: <defaults>
</compile_context>

<pallas_src>
import jax
import jax.numpy as jnp
from jax.experimental import pallas as pl
from jax.experimental.pallas import tpu as pltpu

PAD_TOP = 2


def reflection_pad_top_kernel(x_ref, o_ref):
    # x_ref: (H, C*W) in VMEM; o_ref: (H + PAD_TOP, C*W) in VMEM.
    x = x_ref[...]
    # Reflected rows (edge row not repeated): out row j <- input row (PAD_TOP - j).
    # PAD_TOP is a small static constant, so these are static (1, C*W) slices.
    parts = [x[PAD_TOP - j:PAD_TOP - j + 1, :] for j in range(PAD_TOP)]
    parts.append(x)
    # One composed store of the full output tile: avoids overlapping partial
    # (masked RMW) stores into the same sublane tile.
    o_ref[...] = jnp.concatenate(parts, axis=0)


def reflection_pad2d_top(x):
    """x: (C, H, W) float32 -> (C, H + PAD_TOP, W), reflection-padded on top."""
    C, H, W = x.shape
    # aten.reflection_pad2d requires pad < size of the padded dimension.
    assert H > PAD_TOP, f"reflection_pad2d requires pad_top ({PAD_TOP}) < H ({H})"
    out_h = H + PAD_TOP

    # Lane-dense view: the pad only touches H, so move H to the sublane axis and
    # flatten (C, W) into the lane axis -> (H, C*W). Reshape/transpose happens in
    # the XLA wrapper, not inside the kernel.
    x2d = jnp.transpose(x, (1, 0, 2)).reshape(H, C * W)

    # Whole problem fits in a single VMEM block at this scale, so skip the grid
    # pipeline entirely: memory_space-only BlockSpecs place the full arrays in VMEM
    # with no block/index_map machinery.
    # TODO(synk): for large (C, H, W) this would need a parallel grid over C (or an
    # HBM->HBM async-copy for the bulk rows) with generation-aware block sizing.
    out2d = pl.pallas_call(
        reflection_pad_top_kernel,
        out_shape=jax.ShapeDtypeStruct((out_h, C * W), x.dtype),
        in_specs=[pl.BlockSpec(memory_space=pltpu.MemorySpace.VMEM)],
        out_specs=pl.BlockSpec(memory_space=pltpu.MemorySpace.VMEM),
    )(x2d)

    return jnp.transpose(out2d.reshape(out_h, C, W), (1, 0, 2))


if __name__ == "__main__":
    key = jax.random.PRNGKey(0)
    # Shape matches the module annotation: [1, 3, 4] float32.
    x = jax.random.normal(key, (1, 3, 4), dtype=jnp.float32)

    out = reflection_pad2d_top(x)
    out = jax.block_until_ready(out)

    # Reference: reflection pad of 2 rows on top, no other padding.
    ref = jnp.pad(x, ((0, 0), (PAD_TOP, 0), (0, 0)), mode="reflect")
    assert out.shape == (1, 5, 4), out.shape
    assert jnp.allclose(out, ref), "mismatch vs reference reflection pad"

    print("KERNEL_OK")
</pallas_src>

<mosaic_0001>
module attributes {stable_mosaic.version = 11 : i64} {
  func.func @reflection_pad_top_kernel(%arg0: memref<3x4xf32, #tpu.memory_space<vmem>>, %arg1: memref<5x4xf32, #tpu.memory_space<vmem>>) attributes {dimension_semantics = [], scalar_prefetch = 0 : i64, scratch_operands = 0 : i64, tpu.core_type = #tpu.core_type<tc>} {
    %c0 = arith.constant 0 : index
    %c0_0 = arith.constant 0 : index
    %0 = vector.load %arg0[%c0, %c0_0] : memref<3x4xf32, #tpu.memory_space<vmem>>, vector<3x4xf32>
    %1 = vector.extract_strided_slice %0 {offsets = [2, 0], sizes = [1, 4], strides = [1, 1]} : vector<3x4xf32> to vector<1x4xf32>
    %2 = vector.extract_strided_slice %0 {offsets = [1, 0], sizes = [1, 4], strides = [1, 1]} : vector<3x4xf32> to vector<1x4xf32>
    %3 = tpu.concatenate %1, %2, %0 in 0 : vector<1x4xf32>, vector<1x4xf32>, vector<3x4xf32> -> vector<5x4xf32>
    %c0_1 = arith.constant 0 : index
    %c0_2 = arith.constant 0 : index
    %4 = vector.load %arg1[%c0_1, %c0_2] : memref<5x4xf32, #tpu.memory_space<vmem>>, vector<5x4xf32>
    tpu.vector_store %arg1[%c0_1, %c0_2], %3 {strides = array<i32>} : memref<5x4xf32, #tpu.memory_space<vmem>>, vector<5x4xf32>,
    return
  }
}

</mosaic_0001>

<llo_original>
// kernel: tpu_custom_call.1
$region0: #{tpu_custom_call.1}
  #allocation0 [shape = 'u32[]', space=smem, size = 0x4, offset = 0x4, fixed_abs, tag = 'smem constant byte address 0x4 - core index']
  #allocation1 [shape = 'u32[144,128]{1,0:T(1,128)}', space=vmem, size = 0x12000, scoped, tag = 'internal scratch']
  %s0 = inlined_call_operand.hbm [shape: f32[3,4], index: 0, kind: input, shape index: {}]
  %s1 = inlined_call_operand.vmem [shape: f32[5,4], index: 1, kind: output, shape index: {}]
  %s2 = sld [smem:[#allocation0]]
  $region18: #{tpu_custom_call.1} parent=0
    _
  %s4 = ssub.s32 1, %s2
  %s5 = scalar_select 0, %s4, %s2
  $region1: #{tpu_custom_call.1} parent=0
    #allocation2 [shape = 'u8[2048]{0}', space=vmem, size = 0x800, scoped, tag = 'input window, operand 0, single buffered']
    #allocation3 [shape = 's32[1]{0}', space=sflag, size = 0x4, scoped, tag = 'scoped memory for tpu_custom_call.1']
    %6 = vsyncpa [#allocation3], 0
    // Predicated region
    $region2: #{tpu_custom_call.1} parent=1 // pred_check
      _
    $region3: #{tpu_custom_call.1} parent=1 // pred_check_branch
      %8 = sbr.rel (0) target = $region5
    $region4: #{tpu_custom_call.1} parent=1 // pred_region
      %s10 = ssub.s32 64, 64
      %11 = vsyncadd [#allocation3], %s10
      %s13 = sshll.u32 [#allocation2], 4
      %s14 = int_to_ptr.vmem [resolvable:$true] %s13
      %16 = dma.hbm_to_vmem [thread:$0]  %s0, 64, %s14, [#allocation3]
    $region5: #{tpu_custom_call.1} parent=1 // pred_fallthru
      _
    // Predicated region
    $region6: #{tpu_custom_call.1} parent=1 // pred_check
      _
    $region7: #{tpu_custom_call.1} parent=1 // pred_check_branch
      %18 = sbr.rel (0) target = $region9
    $region8: #{tpu_custom_call.1} parent=1 // pred_region
      %19 = dma.done [#allocation3], 64
    $region9: #{tpu_custom_call.1} parent=1 // pred_fallthru
      _
    %v20 = vld [vmem:[#allocation2] sm:$0x7]
    %v22 = vrot.slane %v20, 2
    %v24 = vrot.slane %v20, 6
    %vm26 = vcmask 1040384
    %v27 = vsel %vm26, %v22, %v20
    %vm28 = vcmask 1041408
    %v29 = vsel %vm28, %v27, %v24
    %vm30 = vcmask 28672
    %31 = vst.msk [vmem:[%s1] sm:$0x1f] %vm30, %v29
    // Predicated region
    $region10: #{tpu_custom_call.1} parent=1 // pred_check
      _
    $region11: #{tpu_custom_call.1} parent=1 // pred_check_branch
      %33 = sbr.rel (0) target = $region13
    $region12: #{tpu_custom_call.1} parent=1 // pred_region
      _
    $region13: #{tpu_custom_call.1} parent=1 // pred_fallthru
      _
    // Predicated region
    $region14: #{tpu_custom_call.1} parent=1 // pred_check
      _
    $region15: #{tpu_custom_call.1} parent=1 // pred_check_branch
      %35 = sbr.rel (0) target = $region17
    $region16: #{tpu_custom_call.1} parent=1 // pred_region
      _
    $region17: #{tpu_custom_call.1} parent=1 // pred_fallthru
      _
    %36 = vsyncpa [#allocation3], 1

</llo_original>
